<compile_context>
chip_gen: v7x
topology: tpu7x:2x2x1
jax: 0.10.0
libtpu: 0.0.40
codegen_flags: <defaults>
</compile_context>

<pallas_src>
import functools

import jax
import jax.numpy as jnp
from jax.experimental import pallas as pl
from jax.experimental.pallas import tpu as pltpu

HIDDEN = 128


def _round_up(x, m):
    return ((x + m - 1) // m) * m


# ----------------------------------------------------------------------------
# Fused kernel: shared layer-1 matmul + per-action rank-1 update + activation
# + per-action masked layer-2 MXU contraction.  Output is Q (TM, A) directly.
# ----------------------------------------------------------------------------
def _mpq_fused_kernel(xin_ref, w1s_ref, w1a_ref, b1_ref, w2m_ref, b2_ref,
                      o_ref, *, state_size: int, action_size: int,
                      activation: str, negative_slope: float):
    S, A = state_size, action_size
    xin = xin_ref[...]                               # (TM, S+A)  packed [state|ap]
    state = xin[:, :S]                               # (TM, S)

    # Shared first-layer work: one small MXU matmul + bias (bias read once).
    # TODO(synk): at very large batches, cast state/w1s to bf16 here (keep
    # preferred_element_type=f32) for native-rate MXU on v6e/v7x; kept f32
    # for tight agreement with the f32 reference at these tiny sizes.
    base = jnp.dot(state, w1s_ref[...],
                   preferred_element_type=jnp.float32) + b1_ref[...]  # (TM, H)

    # Hoist loop-invariant per-action slices out of the unrolled loop.
    w1a = w1a_ref[...]                               # (A, H)
    w2m = w2m_ref[...]                               # (A, H, A) column-masked w2
    ap_cols = [xin[:, S + a:S + a + 1] for a in range(A)]   # each (TM, 1)
    w1a_rows = [w1a[a:a + 1, :] for a in range(A)]          # each (1, H)
    w2_slabs = [w2m[a] for a in range(A)]                   # each (H, A)

    acc = None
    for a in range(A):                               # A is small & static
        # Per-pass layer-1 input differs from `base` only by a rank-1 term
        # (column S+a of the expanded input): pure VPU work.
        h = base + ap_cols[a] * w1a_rows[a]          # (TM, H)
        if activation == "relu":
            h = jnp.maximum(h, 0.0)
        else:  # leaky_relu
            h = jnp.where(h >= 0.0, h, negative_slope * h)
        # Layer-2 column `a` on the MXU: w2_slabs[a] has every column except
        # `a` zeroed, so this contribution lands directly in output lane `a`.
        # (No XLU lane reduce, no width-1 concatenate.)
        contrib = jnp.dot(h, w2_slabs[a], preferred_element_type=jnp.float32)
        acc = contrib if acc is None else acc + contrib
    o_ref[...] = (acc + b2_ref[...]).astype(o_ref.dtype)    # (TM, A)


# ----------------------------------------------------------------------------
# Parameter init (mirrors the PyTorch __init__, deterministic)
# ----------------------------------------------------------------------------
def init_params(key, state_size, action_size, hidden=HIDDEN):
    in_size = state_size + action_size
    k1, k2 = jax.random.split(key)
    # kaiming_normal_ with nonlinearity in {relu, leaky_relu}: std = sqrt(2/fan_in)
    w1_std = jnp.sqrt(2.0 / in_size)
    w1 = jax.random.normal(k1, (in_size, hidden), jnp.float32) * w1_std
    b1 = jnp.zeros((1, hidden), jnp.float32)
    # last layer: normal(mean=0, std=1), zero bias
    w2 = jax.random.normal(k2, (hidden, action_size), jnp.float32)
    b2 = jnp.zeros((1, action_size), jnp.float32)
    return w1, b1, w2, b2


def prepare_params(params, *, state_size, action_size):
    """One-time re-layout of weights into the kernel-friendly form."""
    w1, b1, w2, b2 = params
    w1s = w1[:state_size, :]                 # (S, H)  state part of layer 1
    w1a = w1[state_size:, :]                 # (A, H)  action-parameter part
    # Per-action column-masked layer-2 weights: w2m[a, :, j] = w2[:, a] if j==a else 0
    eye = jnp.eye(action_size, dtype=w2.dtype)                      # (A, A)
    w2m = w2.T[:, :, None] * eye[:, None, :]                        # (A, H, A)
    return w1s, w1a, b1, w2m, b2


# ----------------------------------------------------------------------------
# Wrapper: pack inputs, pad the batch, pick a row tile, call the kernel.
# ----------------------------------------------------------------------------
def multipass_q_actor(state, action_parameters, kernel_params, *,
                      state_size, action_size, activation="relu",
                      negative_slope=0.01, max_row_tile=4096):
    assert activation in ("relu", "leaky_relu")
    w1s, w1a, b1, w2m, b2 = kernel_params
    B = state.shape[0]
    S, A = state_size, action_size
    H = w1s.shape[1]

    # Pack [state | action_parameters] -> one input DMA per grid step.
    xin = jnp.concatenate([state, action_parameters], axis=1)       # (B, S+A)

    # Row tile: ~ceil(B/2) rounded to the 8-row sublane granule so the
    # "parallel" grid has >= 2 steps whenever B > 8 (v7x megacore), capped at
    # max_row_tile to amortize the ~0.35 us/step overhead while staying far
    # under VMEM on all generations (v7x physical VMEM is 64 MiB; at TM=4096
    # every (TM, 128) f32 intermediate is 2 MiB).
    tm = min(max_row_tile, max(8, _round_up(pl.cdiv(B, 2), 8)))
    b_pad = _round_up(B, tm)
    if b_pad != B:
        xin = jnp.pad(xin, ((0, b_pad - B), (0, 0)))
    grid = (b_pad // tm,)

    kernel = functools.partial(_mpq_fused_kernel,
                               state_size=S, action_size=A,
                               activation=activation,
                               negative_slope=negative_slope)

    out = pl.pallas_call(
        kernel,
        out_shape=jax.ShapeDtypeStruct((b_pad, A), jnp.float32),
        grid=grid,
        in_specs=[
            pl.BlockSpec((tm, S + A), lambda i: (i, 0)),     # packed inputs
            pl.BlockSpec((S, H), lambda i: (0, 0)),          # w1 state part
            pl.BlockSpec((A, H), lambda i: (0, 0)),          # w1 ap part
            pl.BlockSpec((1, H), lambda i: (0, 0)),          # b1
            pl.BlockSpec((A, H, A), lambda i: (0, 0, 0)),    # masked w2 slabs
            pl.BlockSpec((1, A), lambda i: (0, 0)),          # b2
        ],
        out_specs=pl.BlockSpec((tm, A), lambda i: (i, 0)),
        compiler_params=pltpu.CompilerParams(
            dimension_semantics=("parallel",)),              # megacore sharding
    )(xin, w1s, w1a, b1, w2m, b2)

    return out[:B] if b_pad != B else out


# ----------------------------------------------------------------------------
# Pure-JAX reference (mirrors the PyTorch forward exactly)
# ----------------------------------------------------------------------------
def reference_forward(state, action_parameters, params, *,
                      state_size, action_size, activation="relu",
                      negative_slope=0.01):
    w1, b1, w2, b2 = params
    B = state.shape[0]
    A, S = action_size, state_size
    x = jnp.concatenate([state, jnp.zeros_like(action_parameters)], axis=1)
    x = jnp.tile(x, (A, 1))
    for a in range(A):
        x = x.at[a * B:(a + 1) * B, S + a].set(action_parameters[:, a])
    h = x @ w1 + b1[0]
    h = jnp.maximum(h, 0.0) if activation == "relu" else jnp.where(
        h >= 0.0, h, negative_slope * h)
    q_all = h @ w2 + b2[0]
    cols = [q_all[a * B:(a + 1) * B, a:a + 1] for a in range(A)]
    return jnp.concatenate(cols, axis=1)


if __name__ == "__main__":
    STATE_SIZE = 9
    ACTION_SIZE = 3
    ACTION_PARAM_SIZE = 3
    BATCH = 2

    key = jax.random.PRNGKey(0)
    kp, ks, ka = jax.random.split(key, 3)

    params = init_params(kp, STATE_SIZE, ACTION_SIZE, hidden=HIDDEN)
    kparams = prepare_params(params, state_size=STATE_SIZE,
                             action_size=ACTION_SIZE)
    state = jax.random.normal(ks, (BATCH, STATE_SIZE), jnp.float32)
    action_parameters = jax.random.normal(ka, (BATCH, ACTION_PARAM_SIZE),
                                          jnp.float32)

    for act in ("relu", "leaky_relu"):
        q = multipass_q_actor(state, action_parameters, kparams,
                              state_size=STATE_SIZE, action_size=ACTION_SIZE,
                              activation=act)
        q = jax.block_until_ready(q)

        q_ref = reference_forward(state, action_parameters, params,
                                  state_size=STATE_SIZE,
                                  action_size=ACTION_SIZE, activation=act)
        assert q.shape == (BATCH, ACTION_SIZE), q.shape
        assert jnp.allclose(q, q_ref, atol=1e-4, rtol=1e-4), (act, q, q_ref)

    print("KERNEL_OK")
</pallas_src>

<mosaic_0001>
module attributes {stable_mosaic.version = 11 : i64} {
  func.func @_mpq_fused_kernel(%arg0: i32, %arg1: memref<8x12xf32, #tpu.memory_space<vmem>>, %arg2: memref<9x128xf32, #tpu.memory_space<vmem>>, %arg3: memref<3x128xf32, #tpu.memory_space<vmem>>, %arg4: memref<1x128xf32, #tpu.memory_space<vmem>>, %arg5: memref<3x128x3xf32, #tpu.memory_space<vmem>>, %arg6: memref<1x3xf32, #tpu.memory_space<vmem>>, %arg7: memref<8x3xf32, #tpu.memory_space<vmem>>) attributes {dimension_semantics = [#tpu.dimension_semantics<parallel>], iteration_bounds = array<i64: 1>, scalar_prefetch = 0 : i64, scratch_operands = 0 : i64, tpu.core_type = #tpu.core_type<tc>, window_params = [{transform_indices = @transform_0, window_bounds = array<i64: 8, 12>}, {pipeline_mode = #tpu.pipeline_mode<synchronous>, transform_indices = @transform_1, window_bounds = array<i64: 9, 128>}, {pipeline_mode = #tpu.pipeline_mode<synchronous>, transform_indices = @transform_2, window_bounds = array<i64: 3, 128>}, {pipeline_mode = #tpu.pipeline_mode<synchronous>, transform_indices = @transform_3, window_bounds = array<i64: 1, 128>}, {pipeline_mode = #tpu.pipeline_mode<synchronous>, transform_indices = @transform_4, window_bounds = array<i64: 3, 128, 3>}, {pipeline_mode = #tpu.pipeline_mode<synchronous>, transform_indices = @transform_5, window_bounds = array<i64: 1, 3>}, {transform_indices = @transform_6, window_bounds = array<i64: 8, 3>}]} {
    %c0 = arith.constant 0 : index
    %c0_0 = arith.constant 0 : index
    %0 = vector.load %arg1[%c0, %c0_0] : memref<8x12xf32, #tpu.memory_space<vmem>>, vector<8x12xf32>
    %1 = vector.extract_strided_slice %0 {offsets = [0, 0], sizes = [8, 9], strides = [1, 1]} : vector<8x12xf32> to vector<8x9xf32>
    %c0_1 = arith.constant 0 : index
    %c0_2 = arith.constant 0 : index
    %2 = vector.load %arg2[%c0_1, %c0_2] : memref<9x128xf32, #tpu.memory_space<vmem>>, vector<9x128xf32>
    %cst = arith.constant dense<0.000000e+00> : vector<8x128xf32>
    %3 = tpu.matmul %1, %2, %cst {dimension_numbers = #tpu.dot_dimension_numbers<[1], [0], [0], [1], [0, 0, 1, 1], [], []>} : vector<8x9xf32>, vector<9x128xf32>, vector<8x128xf32> -> vector<8x128xf32>
    %c0_3 = arith.constant 0 : index
    %c0_4 = arith.constant 0 : index
    %4 = vector.load %arg4[%c0_3, %c0_4] : memref<1x128xf32, #tpu.memory_space<vmem>>, vector<1x128xf32>
    %5 = vector.broadcast %4 : vector<1x128xf32> to vector<8x128xf32>
    %6 = arith.addf %3, %5 : vector<8x128xf32>
    %c0_5 = arith.constant 0 : index
    %c0_6 = arith.constant 0 : index
    %7 = vector.load %arg3[%c0_5, %c0_6] : memref<3x128xf32, #tpu.memory_space<vmem>>, vector<3x128xf32>
    %c0_7 = arith.constant 0 : index
    %c0_8 = arith.constant 0 : index
    %c0_9 = arith.constant 0 : index
    %8 = vector.load %arg5[%c0_7, %c0_8, %c0_9] : memref<3x128x3xf32, #tpu.memory_space<vmem>>, vector<3x128x3xf32>
    %9 = vector.extract_strided_slice %0 {offsets = [0, 9], sizes = [8, 1], strides = [1, 1]} : vector<8x12xf32> to vector<8x1xf32>
    %10 = vector.extract_strided_slice %0 {offsets = [0, 10], sizes = [8, 1], strides = [1, 1]} : vector<8x12xf32> to vector<8x1xf32>
    %11 = vector.extract_strided_slice %0 {offsets = [0, 11], sizes = [8, 1], strides = [1, 1]} : vector<8x12xf32> to vector<8x1xf32>
    %12 = vector.extract_strided_slice %7 {offsets = [0, 0], sizes = [1, 128], strides = [1, 1]} : vector<3x128xf32> to vector<1x128xf32>
    %13 = vector.extract_strided_slice %7 {offsets = [1, 0], sizes = [1, 128], strides = [1, 1]} : vector<3x128xf32> to vector<1x128xf32>
    %14 = vector.extract_strided_slice %7 {offsets = [2, 0], sizes = [1, 128], strides = [1, 1]} : vector<3x128xf32> to vector<1x128xf32>
    %15 = vector.extract_strided_slice %8 {offsets = [0, 0, 0], sizes = [1, 128, 3], strides = [1, 1, 1]} : vector<3x128x3xf32> to vector<1x128x3xf32>
    %16 = vector.shape_cast %15 : vector<1x128x3xf32> to vector<128x3xf32>
    %17 = vector.extract_strided_slice %8 {offsets = [1, 0, 0], sizes = [1, 128, 3], strides = [1, 1, 1]} : vector<3x128x3xf32> to vector<1x128x3xf32>
    %18 = vector.shape_cast %17 : vector<1x128x3xf32> to vector<128x3xf32>
    %19 = vector.extract_strided_slice %8 {offsets = [2, 0, 0], sizes = [1, 128, 3], strides = [1, 1, 1]} : vector<3x128x3xf32> to vector<1x128x3xf32>
    %20 = vector.shape_cast %19 : vector<1x128x3xf32> to vector<128x3xf32>
    %21 = vector.broadcast %9 : vector<8x1xf32> to vector<8x128xf32>
    %22 = vector.broadcast %12 : vector<1x128xf32> to vector<8x128xf32>
    %23 = arith.mulf %21, %22 : vector<8x128xf32>
    %24 = arith.addf %6, %23 : vector<8x128xf32>
    %cst_10 = arith.constant 0.000000e+00 : f32
    %25 = vector.broadcast %cst_10 : f32 to vector<8x128xf32>
    %26 = arith.maximumf %24, %25 : vector<8x128xf32>
    %cst_11 = arith.constant dense<0.000000e+00> : vector<8x3xf32>
    %27 = tpu.matmul %26, %16, %cst_11 {dimension_numbers = #tpu.dot_dimension_numbers<[1], [0], [0], [1], [0, 0, 1, 1], [], []>} : vector<8x128xf32>, vector<128x3xf32>, vector<8x3xf32> -> vector<8x3xf32>
    %28 = vector.broadcast %10 : vector<8x1xf32> to vector<8x128xf32>
    %29 = vector.broadcast %13 : vector<1x128xf32> to vector<8x128xf32>
    %30 = arith.mulf %28, %29 : vector<8x128xf32>
    %31 = arith.addf %6, %30 : vector<8x128xf32>
    %cst_12 = arith.constant 0.000000e+00 : f32
    %32 = vector.broadcast %cst_12 : f32 to vector<8x128xf32>
    %33 = arith.maximumf %31, %32 : vector<8x128xf32>
    %cst_13 = arith.constant dense<0.000000e+00> : vector<8x3xf32>
    %34 = tpu.matmul %33, %18, %cst_13 {dimension_numbers = #tpu.dot_dimension_numbers<[1], [0], [0], [1], [0, 0, 1, 1], [], []>} : vector<8x128xf32>, vector<128x3xf32>, vector<8x3xf32> -> vector<8x3xf32>
    %35 = arith.addf %27, %34 : vector<8x3xf32>
    %36 = vector.broadcast %11 : vector<8x1xf32> to vector<8x128xf32>
    %37 = vector.broadcast %14 : vector<1x128xf32> to vector<8x128xf32>
    %38 = arith.mulf %36, %37 : vector<8x128xf32>
    %39 = arith.addf %6, %38 : vector<8x128xf32>
    %cst_14 = arith.constant 0.000000e+00 : f32
    %40 = vector.broadcast %cst_14 : f32 to vector<8x128xf32>
    %41 = arith.maximumf %39, %40 : vector<8x128xf32>
    %cst_15 = arith.constant dense<0.000000e+00> : vector<8x3xf32>
    %42 = tpu.matmul %41, %20, %cst_15 {dimension_numbers = #tpu.dot_dimension_numbers<[1], [0], [0], [1], [0, 0, 1, 1], [], []>} : vector<8x128xf32>, vector<128x3xf32>, vector<8x3xf32> -> vector<8x3xf32>
    %43 = arith.addf %35, %42 : vector<8x3xf32>
    %c0_16 = arith.constant 0 : index
    %c0_17 = arith.constant 0 : index
    %44 = vector.load %arg6[%c0_16, %c0_17] : memref<1x3xf32, #tpu.memory_space<vmem>>, vector<1x3xf32>
    %45 = vector.broadcast %44 : vector<1x3xf32> to vector<8x3xf32>
    %46 = arith.addf %43, %45 : vector<8x3xf32>
    %c0_18 = arith.constant 0 : index
    %c0_19 = arith.constant 0 : index
    %47 = vector.load %arg7[%c0_18, %c0_19] : memref<8x3xf32, #tpu.memory_space<vmem>>, vector<8x3xf32>
    tpu.vector_store %arg7[%c0_18, %c0_19], %46 {strides = array<i32>} : memref<8x3xf32, #tpu.memory_space<vmem>>, vector<8x3xf32>,
    return
  }
  func.func @transform_0(%arg0: i32) -> (i32, i32) {
    %c0_i32 = arith.constant 0 : i32
    %c0_i32_0 = arith.constant 0 : i32
    return %arg0, %c0_i32 : i32, i32
  }
  func.func @transform_1(%arg0: i32) -> (i32, i32) {
    %c0_i32 = arith.constant 0 : i32
    %c0_i32_0 = arith.constant 0 : i32
    %c0_i32_1 = arith.constant 0 : i32
    return %c0_i32, %c0_i32_0 : i32, i32
  }
  func.func @transform_2(%arg0: i32) -> (i32, i32) {
    %c0_i32 = arith.constant 0 : i32
    %c0_i32_0 = arith.constant 0 : i32
    %c0_i32_1 = arith.constant 0 : i32
    return %c0_i32, %c0_i32_0 : i32, i32
  }
  func.func @transform_3(%arg0: i32) -> (i32, i32) {
    %c0_i32 = arith.constant 0 : i32
    %c0_i32_0 = arith.constant 0 : i32
    %c0_i32_1 = arith.constant 0 : i32
    return %c0_i32, %c0_i32_0 : i32, i32
  }
  func.func @transform_4(%arg0: i32) -> (i32, i32, i32) {
    %c0_i32 = arith.constant 0 : i32
    %c0_i32_0 = arith.constant 0 : i32
    %c0_i32_1 = arith.constant 0 : i32
    %c0_i32_2 = arith.constant 0 : i32
    return %c0_i32, %c0_i32_0, %c0_i32_1 : i32, i32, i32
  }
  func.func @transform_5(%arg0: i32) -> (i32, i32) {
    %c0_i32 = arith.constant 0 : i32
    %c0_i32_0 = arith.constant 0 : i32
    %c0_i32_1 = arith.constant 0 : i32
    return %c0_i32, %c0_i32_0 : i32, i32
  }
  func.func @transform_6(%arg0: i32) -> (i32, i32) {
    %c0_i32 = arith.constant 0 : i32
    %c0_i32_0 = arith.constant 0 : i32
    return %arg0, %c0_i32 : i32, i32
  }
}

</mosaic_0001>

<llo_original>
// kernel: tpu_custom_call.1
$region0: #{tpu_custom_call.1}
  #allocation0 [shape = 'u32[]', space=smem, size = 0x4, offset = 0x4, fixed_abs, tag = 'smem constant byte address 0x4 - core index']
  #allocation1 [shape = 'u32[144,128]{1,0:T(1,128)}', space=vmem, size = 0x12000, scoped, tag = 'internal scratch']
  %s0 = inlined_call_operand.vmem [shape: f32[8,12], index: 0, kind: input, shape index: {}]
  %s1 = inlined_call_operand.vmem [shape: f32[9,128], index: 1, kind: input, shape index: {}]
  %s2 = inlined_call_operand.vmem [shape: f32[3,128], index: 2, kind: input, shape index: {}]
  %s3 = inlined_call_operand.vmem [shape: f32[1,128], index: 3, kind: input, shape index: {}]
  %s4 = inlined_call_operand.vmem [shape: f32[3,128,3], index: 4, kind: input, shape index: {}]
  %s5 = inlined_call_operand.vmem [shape: f32[1,3], index: 5, kind: input, shape index: {}]
  %s6 = inlined_call_operand.vmem [shape: f32[8,3], index: 6, kind: output, shape index: {}]
  %s7 = sld [smem:[#allocation0]]
  $region34: #{tpu_custom_call.1} parent=0
    _
  %s9 = ssub.s32 1, %s7
  %s10 = scalar_select 0, %s9, %s7
  // Predicated region
  $region2: #{tpu_custom_call.1} parent=0 // pred_check
    _
  $region3: #{tpu_custom_call.1} parent=0 // pred_check_branch
    %12 = sbr.rel (0) target = $region5
  $region4: #{tpu_custom_call.1} parent=0 // pred_region
    _
  $region5: #{tpu_custom_call.1} parent=0 // pred_fallthru
    _
  // Predicated region
  $region6: #{tpu_custom_call.1} parent=0 // pred_check
    _
  $region7: #{tpu_custom_call.1} parent=0 // pred_check_branch
    %14 = sbr.rel (0) target = $region9
  $region8: #{tpu_custom_call.1} parent=0 // pred_region
    _
  $region9: #{tpu_custom_call.1} parent=0 // pred_fallthru
    _
  // Predicated region
  $region10: #{tpu_custom_call.1} parent=0 // pred_check
    _
  $region11: #{tpu_custom_call.1} parent=0 // pred_check_branch
    %16 = sbr.rel (0) target = $region13
  $region12: #{tpu_custom_call.1} parent=0 // pred_region
    _
  $region13: #{tpu_custom_call.1} parent=0 // pred_fallthru
    _
  // Predicated region
  $region14: #{tpu_custom_call.1} parent=0 // pred_check
    _
  $region15: #{tpu_custom_call.1} parent=0 // pred_check_branch
    %18 = sbr.rel (0) target = $region17
  $region16: #{tpu_custom_call.1} parent=0 // pred_region
    _
  $region17: #{tpu_custom_call.1} parent=0 // pred_fallthru
    _
  // Predicated region
  $region18: #{tpu_custom_call.1} parent=0 // pred_check
    _
  $region19: #{tpu_custom_call.1} parent=0 // pred_check_branch
    %20 = sbr.rel (0) target = $region21
  $region20: #{tpu_custom_call.1} parent=0 // pred_region
    _
  $region21: #{tpu_custom_call.1} parent=0 // pred_fallthru
    _
  // Predicated region
  $region22: #{tpu_custom_call.1} parent=0 // pred_check
    _
  $region23: #{tpu_custom_call.1} parent=0 // pred_check_branch
    %22 = sbr.rel (0) target = $region25
  $region24: #{tpu_custom_call.1} parent=0 // pred_region
    _
  $region25: #{tpu_custom_call.1} parent=0 // pred_fallthru
    _
  %v23 = vld [vmem:[%s0] sm:$0xff]
  %v24 = vld [vmem:[%s1] sm:$0xff]
  %v25 = vld [vmem:[%s1 + $0x8] sm:$0x1]
  %v26 = vld [vmem:[%s3] sm:$0x1]
  %v28 = vlaneseq
  %v29 = vshrl.u32 %v28, 7
  %v30 = vsub.s32 0, %v29
  %v31 = vrot.slane %v26, %v30
  %vm33 = vcmask 72704
  %v35 = vsel %vm33, %v23, 0
  %vm37 = vcmask 1040384
  %v39 = vsel %vm37, %v25, 0
  %41 = vmatprep.subr.mxu0 0.0
  %42 = vmatpush1.msra.mxu0 %v24
  %43 = vmatprep.subr.mxu0 0.0
  %44 = vmatpush1.msra.mxu0 %v39
  %45 = vmatprep.subr.mxu0 0.0
  %46 = vmatpush1.msra.mxu0 0.0
  %47 = vmatprep.subr.mxu0 0.0
  %48 = vmatpush1.msra.mxu0 0.0
  %49 = vmatprep.subr.mxu0 0.0
  %50 = vmatpush1.msra.mxu0 0.0
  %51 = vmatprep.subr.mxu0 0.0
  %52 = vmatpush1.msra.mxu0 0.0
  %53 = vmatprep.subr.mxu0 0.0
  %54 = vmatpush1.msra.mxu0 0.0
  %55 = vmatprep.subr.mxu0 0.0
  %56 = vmatpush1.msra.mxu0 0.0
  %57 = vmatprep.subr.mxu0 0.0
  %58 = vmatpush1.msra.mxu0 0.0
  %59 = vmatprep.subr.mxu0 0.0
  %60 = vmatpush1.msra.mxu0 0.0
  %61 = vmatprep.subr.mxu0 0.0
  %62 = vmatpush1.msra.mxu0 0.0
  %63 = vmatprep.subr.mxu0 0.0
  %64 = vmatpush1.msra.mxu0 0.0
  %65 = vmatprep.subr.mxu0 0.0
  %66 = vmatpush1.msra.mxu0 0.0
  %67 = vmatprep.subr.mxu0 0.0
  %68 = vmatpush1.msra.mxu0 0.0
  %69 = vmatprep.subr.mxu0 0.0
  %70 = vmatpush1.msra.mxu0 0.0
  %71 = vmatprep.subr.mxu0 0.0
  %72 = vmatpush1.msra.mxu0 0.0
  %73 = vmatprep.subr.mxu0 0.0
  %74 = vmatpush1.msra.mxu0 0.0
  %75 = vmatprep.subr.mxu0 0.0
  %76 = vmatpush1.msra.mxu0 0.0
  %77 = vmatprep.subr.mxu0 0.0
  %78 = vmatpush1.msra.mxu0 0.0
  %79 = vmatprep.subr.mxu0 0.0
  %80 = vmatpush1.msra.mxu0 0.0
  %81 = vmatprep.subr.mxu0 0.0
  %82 = vmatpush1.msra.mxu0 0.0
  %83 = vmatprep.subr.mxu0 0.0
  %84 = vmatpush1.msra.mxu0 0.0
  %85 = vmatprep.subr.mxu0 0.0
  %86 = vmatpush1.msra.mxu0 0.0
  %87 = vmatprep.subr.mxu0 0.0
  %88 = vmatpush1.msra.mxu0 0.0
  %89 = vmatprep.subr.mxu0 0.0
  %90 = vmatpush1.msra.mxu0 0.0
  %91 = vmatprep.subr.mxu0 0.0
  %92 = vmatpush1.msra.mxu0 0.0
  %93 = vmatprep.subr.mxu0 0.0
  %94 = vmatpush1.msra.mxu0 0.0
  %95 = vmatprep.subr.mxu0 0.0
  %96 = vmatpush1.msra.mxu0 0.0
  %97 = vmatprep.subr.mxu0 0.0
  %98 = vmatpush1.msra.mxu0 0.0
  %99 = vmatprep.subr.mxu0 0.0
  %100 = vmatpush1.msra.mxu0 0.0
  %101 = vmatprep.subr.mxu0 0.0
  %102 = vmatpush1.msra.mxu0 0.0
  %103 = vmatprep.subr.mxu0 0.0
  %104 = vmatpush1.msra.mxu0 0.0
  %105 = vmatprep.mubr.f32.mxu0 0.0
  %106 = vmatmul.mubr.f32.gmra.mrb[0].mxu0 %v35
  %v107 = vpop.f32.mrb[0].mxu0
  %v108 = vadd.f32 %v31, %v107
  %v109 = vpop.f32.mrb[0].mxu0
  %110 = vdwg.mxu0
  %v111 = vld [vmem:[%s2] sm:$0x7]
  %v112 = vld [vmem:[%s4] sm:$0xff]
  %v113 = vld [vmem:[%s4 + $0x8] sm:$0xff]
  %v114 = vld [vmem:[%s4 + $0x10] sm:$0xff]
  %v115 = vld [vmem:[%s4 + $0x18] sm:$0xff]
  %v116 = vld [vmem:[%s4 + $0x20] sm:$0xff]
  %v117 = vld [vmem:[%s4 + $0x28] sm:$0xff]
  %v118 = vld [vmem:[%s4 + $0x30] sm:$0xff]
  %v119 = vld [vmem:[%s4 + $0x38] sm:$0xff]
  %v120 = vld [vmem:[%s4 + $0x40] sm:$0xff]
  %v121 = vld [vmem:[%s4 + $0x48] sm:$0xff]
  %v122 = vld [vmem:[%s4 + $0x50] sm:$0xff]
  %v123 = vld [vmem:[%s4 + $0x58] sm:$0xff]
  %v124 = vld [vmem:[%s4 + $0x60] sm:$0xff]
  %v125 = vld [vmem:[%s4 + $0x68] sm:$0xff]
  %v126 = vld [vmem:[%s4 + $0x70] sm:$0xff]
  %v127 = vld [vmem:[%s4 + $0x78] sm:$0xff]
  %v128 = vld [vmem:[%s4 + $0x80] sm:$0xff]
  %v129 = vld [vmem:[%s4 + $0x88] sm:$0xff]
  %v130 = vld [vmem:[%s4 + $0x90] sm:$0xff]
  %v131 = vld [vmem:[%s4 + $0x98] sm:$0xff]
  %v132 = vld [vmem:[%s4 + $0xa0] sm:$0xff]
  %v133 = vld [vmem:[%s4 + $0xa8] sm:$0xff]
  %v134 = vld [vmem:[%s4 + $0xb0] sm:$0xff]
  %v135 = vld [vmem:[%s4 + $0xb8] sm:$0xff]
  %v136 = vld [vmem:[%s4 + $0xc0] sm:$0xff]
  %v137 = vld [vmem:[%s4 + $0xc8] sm:$0xff]
  %v138 = vld [vmem:[%s4 + $0xd0] sm:$0xff]
  %v139 = vld [vmem:[%s4 + $0xd8] sm:$0xff]
  %v140 = vld [vmem:[%s4 + $0xe0] sm:$0xff]
  %v141 = vld [vmem:[%s4 + $0xe8] sm:$0xff]
  %v142 = vld [vmem:[%s4 + $0xf0] sm:$0xff]
  %v143 = vld [vmem:[%s4 + $0xf8] sm:$0xff]
  %v144 = vld [vmem:[%s4 + $0x100] sm:$0xff]
  %v145 = vld [vmem:[%s4 + $0x108] sm:$0xff]
  %v146 = vld [vmem:[%s4 + $0x110] sm:$0xff]
  %v147 = vld [vmem:[%s4 + $0x118] sm:$0xff]
  %v148 = vld [vmem:[%s4 + $0x120] sm:$0xff]
  %v149 = vld [vmem:[%s4 + $0x128] sm:$0xff]
  %v150 = vld [vmem:[%s4 + $0x130] sm:$0xff]
  %v151 = vld [vmem:[%s4 + $0x138] sm:$0xff]
  %v152 = vld [vmem:[%s4 + $0x140] sm:$0xff]
  %v153 = vld [vmem:[%s4 + $0x148] sm:$0xff]
  %v154 = vld [vmem:[%s4 + $0x150] sm:$0xff]
  %v155 = vld [vmem:[%s4 + $0x158] sm:$0xff]
  %v156 = vld [vmem:[%s4 + $0x160] sm:$0xff]
  %v157 = vld [vmem:[%s4 + $0x168] sm:$0xff]
  %v158 = vld [vmem:[%s4 + $0x170] sm:$0xff]
  %v159 = vld [vmem:[%s4 + $0x178] sm:$0xff]
  %160 = vset.pattern.permute.xlu0 9
  %161 = vperm.xlu0 %160, %v23
  %v162 = vpop.permute.xlu0 %161
  %v164 = vlaneseq
  %v165 = vshrl.u32 %v164, 7
  %v166 = vsub.s32 0, %v165
  %v167 = vrot.slane %v111, %v166
  %v168 = vmul.f32 %v162, %v167
  %v169 = vadd.f32 %v108, %v168
  %v170 = vmax.f32 %v169, 0.0
  %171 = vset.pattern.permute.xlu0 10
  %172 = vperm.xlu0 %171, %v23
  %v173 = vpop.permute.xlu0 %172
  %v175 = vlaneseq
  %v176 = vshrl.u32 %v175, 7
  %v177 = vsub.s32 1, %v176
  %v178 = vrot.slane %v111, %v177
  %v179 = vmul.f32 %v173, %v178
  %v180 = vadd.f32 %v108, %v179
  %v181 = vmax.f32 %v180, 0.0
  %182 = vmatprep.subr.mxu0 0.0
  %183 = vmatpush1.msra.mxu0 %v128
  %184 = vmatprep.subr.mxu0 0.0
  %185 = vmatpush1.msra.mxu0 %v129
  %186 = vmatprep.subr.mxu0 0.0
  %187 = vmatpush1.msra.mxu0 %v130
  %188 = vmatprep.subr.mxu0 0.0
  %189 = vmatpush1.msra.mxu0 %v131
  %190 = vmatprep.subr.mxu0 0.0
  %191 = vmatpush1.msra.mxu0 %v132
  %192 = vmatprep.subr.mxu0 0.0
  %193 = vmatpush1.msra.mxu0 %v133
  %194 = vmatprep.subr.mxu0 0.0
  %195 = vmatpush1.msra.mxu0 %v134
  %196 = vmatprep.subr.mxu0 0.0
  %197 = vmatpush1.msra.mxu0 %v135
  %198 = vmatprep.subr.mxu0 0.0
  %199 = vmatpush1.msra.mxu0 %v136
  %200 = vmatprep.subr.mxu0 0.0
  %201 = vmatpush1.msra.mxu0 %v137
  %202 = vmatprep.subr.mxu0 0.0
  %203 = vmatpush1.msra.mxu0 %v138
  %204 = vmatprep.subr.mxu0 0.0
  %205 = vmatpush1.msra.mxu0 %v139
  %206 = vmatprep.subr.mxu0 0.0
  %207 = vmatpush1.msra.mxu0 %v140
  %208 = vmatprep.subr.mxu0 0.0
  %209 = vmatpush1.msra.mxu0 %v141
  %210 = vmatprep.subr.mxu0 0.0
  %211 = vmatpush1.msra.mxu0 %v142
  %212 = vmatprep.subr.mxu0 0.0
  %213 = vmatpush1.msra.mxu0 %v143
  %214 = vmatprep.subr.mxu0 0.0
  %215 = vmatpush1.msra.mxu0 0.0
  %216 = vmatprep.subr.mxu0 0.0
  %217 = vmatpush1.msra.mxu0 0.0
  %218 = vmatprep.subr.mxu0 0.0
  %219 = vmatpush1.msra.mxu0 0.0
  %220 = vmatprep.subr.mxu0 0.0
  %221 = vmatpush1.msra.mxu0 0.0
  %222 = vmatprep.subr.mxu0 0.0
  %223 = vmatpush1.msra.mxu0 0.0
  %224 = vmatprep.subr.mxu0 0.0
  %225 = vmatpush1.msra.mxu0 0.0
  %226 = vmatprep.subr.mxu0 0.0
  %227 = vmatpush1.msra.mxu0 0.0
  %228 = vmatprep.subr.mxu0 0.0
  %229 = vmatpush1.msra.mxu0 0.0
  %230 = vmatprep.subr.mxu0 0.0
  %231 = vmatpush1.msra.mxu0 0.0
  %232 = vmatprep.subr.mxu0 0.0
  %233 = vmatpush1.msra.mxu0 0.0
  %234 = vmatprep.subr.mxu0 0.0
  %235 = vmatpush1.msra.mxu0 0.0
  %236 = vmatprep.subr.mxu0 0.0
  %237 = vmatpush1.msra.mxu0 0.0
  %238 = vmatprep.subr.mxu0 0.0
  %239 = vmatpush1.msra.mxu0 0.0
  %240 = vmatprep.subr.mxu0 0.0
  %241 = vmatpush1.msra.mxu0 0.0
  %242 = vmatprep.subr.mxu0 0.0
  %243 = vmatpush1.msra.mxu0 0.0
  %244 = vmatprep.subr.mxu0 0.0
  %245 = vmatpush1.msra.mxu0 0.0
  %246 = vmatprep.mubr.f32.mxu0 0.0
  %247 = vmatmul.mubr.f32.gmra.mrb[0].mxu0 %v181
  %v248 = vpop.f32.mrb[0].mxu0
  %v249 = vadd.f32 0.0, %v248
  %v250 = vpop.f32.mrb[0].mxu0
  %251 = vdwg.mxu0
  %252 = vmatprep.subr.mxu0 0.0
  %253 = vmatpush1.msra.mxu0 %v112
  %254 = vmatprep.subr.mxu0 0.0
  %255 = vmatpush1.msra.mxu0 %v113
  %256 = vmatprep.subr.mxu0 0.0
  %257 = vmatpush1.msra.mxu0 %v114
  %258 = vmatprep.subr.mxu0 0.0
  %259 = vmatpush1.msra.mxu0 %v115
  %260 = vmatprep.subr.mxu0 0.0
  %261 = vmatpush1.msra.mxu0 %v116
  %262 = vmatprep.subr.mxu0 0.0
  %263 = vmatpush1.msra.mxu0 %v117
  %264 = vmatprep.subr.mxu0 0.0
  %265 = vmatpush1.msra.mxu0 %v118
  %266 = vmatprep.subr.mxu0 0.0
  %267 = vmatpush1.msra.mxu0 %v119
  %268 = vmatprep.subr.mxu0 0.0
  %269 = vmatpush1.msra.mxu0 %v120
  %270 = vmatprep.subr.mxu0 0.0
  %271 = vmatpush1.msra.mxu0 %v121
  %272 = vmatprep.subr.mxu0 0.0
  %273 = vmatpush1.msra.mxu0 %v122
  %274 = vmatprep.subr.mxu0 0.0
  %275 = vmatpush1.msra.mxu0 %v123
  %276 = vmatprep.subr.mxu0 0.0
  %277 = vmatpush1.msra.mxu0 %v124
  %278 = vmatprep.subr.mxu0 0.0
  %279 = vmatpush1.msra.mxu0 %v125
  %280 = vmatprep.subr.mxu0 0.0
  %281 = vmatpush1.msra.mxu0 %v126
  %282 = vmatprep.subr.mxu0 0.0
  %283 = vmatpush1.msra.mxu0 %v127
  %284 = vmatprep.subr.mxu0 0.0
  %285 = vmatpush1.msra.mxu0 0.0
  %286 = vmatprep.subr.mxu0 0.0
  %287 = vmatpush1.msra.mxu0 0.0
  %288 = vmatprep.subr.mxu0 0.0
  %289 = vmatpush1.msra.mxu0 0.0
  %290 = vmatprep.subr.mxu0 0.0
  %291 = vmatpush1.msra.mxu0 0.0
  %292 = vmatprep.subr.mxu0 0.0
  %293 = vmatpush1.msra.mxu0 0.0
  %294 = vmatprep.subr.mxu0 0.0
  %295 = vmatpush1.msra.mxu0 0.0
  %296 = vmatprep.subr.mxu0 0.0
  %297 = vmatpush1.msra.mxu0 0.0
  %298 = vmatprep.subr.mxu0 0.0
  %299 = vmatpush1.msra.mxu0 0.0
  %300 = vmatprep.subr.mxu0 0.0
  %301 = vmatpush1.msra.mxu0 0.0
  %302 = vmatprep.subr.mxu0 0.0
  %303 = vmatpush1.msra.mxu0 0.0
  %304 = vmatprep.subr.mxu0 0.0
  %305 = vmatpush1.msra.mxu0 0.0
  %306 = vmatprep.subr.mxu0 0.0
  %307 = vmatpush1.msra.mxu0 0.0
  %308 = vmatprep.subr.mxu0 0.0
  %309 = vmatpush1.msra.mxu0 0.0
  %310 = vmatprep.subr.mxu0 0.0
  %311 = vmatpush1.msra.mxu0 0.0
  %312 = vmatprep.subr.mxu0 0.0
  %313 = vmatpush1.msra.mxu0 0.0
  %314 = vmatprep.subr.mxu0 0.0
  %315 = vmatpush1.msra.mxu0 0.0
  %316 = vmatprep.mubr.f32.mxu0 0.0
  %317 = vmatmul.mubr.f32.gmra.mrb[0].mxu0 %v170
  %v318 = vpop.f32.mrb[0].mxu0
  %v319 = vadd.f32 %v249, %v318
  %v320 = vpop.f32.mrb[0].mxu0
  %321 = vdwg.mxu0
  %322 = vset.pattern.permute.xlu0 11
  %323 = vperm.xlu0 %322, %v23
  %v324 = vpop.permute.xlu0 %323
  %v326 = vlaneseq
  %v327 = vshrl.u32 %v326, 7
  %v328 = vsub.s32 2, %v327
  %v329 = vrot.slane %v111, %v328
  %v330 = vmul.f32 %v324, %v329
  %v331 = vadd.f32 %v108, %v330
  %v332 = vmax.f32 %v331, 0.0
  %333 = vmatprep.subr.mxu0 0.0
  %334 = vmatpush1.msra.mxu0 %v144
  %335 = vmatprep.subr.mxu0 0.0
  %336 = vmatpush1.msra.mxu0 %v145
  %337 = vmatprep.subr.mxu0 0.0
  %338 = vmatpush1.msra.mxu0 %v146
  %339 = vmatprep.subr.mxu0 0.0
  %340 = vmatpush1.msra.mxu0 %v147
  %341 = vmatprep.subr.mxu0 0.0
  %342 = vmatpush1.msra.mxu0 %v148
  %343 = vmatprep.subr.mxu0 0.0
  %344 = vmatpush1.msra.mxu0 %v149
  %345 = vmatprep.subr.mxu0 0.0
  %346 = vmatpush1.msra.mxu0 %v150
  %347 = vmatprep.subr.mxu0 0.0
  %348 = vmatpush1.msra.mxu0 %v151
  %349 = vmatprep.subr.mxu0 0.0
  %350 = vmatpush1.msra.mxu0 %v152
  %351 = vmatprep.subr.mxu0 0.0
  %352 = vmatpush1.msra.mxu0 %v153
  %353 = vmatprep.subr.mxu0 0.0
  %354 = vmatpush1.msra.mxu0 %v154
  %355 = vmatprep.subr.mxu0 0.0
  %356 = vmatpush1.msra.mxu0 %v155
  %357 = vmatprep.subr.mxu0 0.0
  %358 = vmatpush1.msra.mxu0 %v156
  %359 = vmatprep.subr.mxu0 0.0
  %360 = vmatpush1.msra.mxu0 %v157
  %361 = vmatprep.subr.mxu0 0.0
  %362 = vmatpush1.msra.mxu0 %v158
  %363 = vmatprep.subr.mxu0 0.0
  %364 = vmatpush1.msra.mxu0 %v159
  %365 = vmatprep.subr.mxu0 0.0
  %366 = vmatpush1.msra.mxu0 0.0
  %367 = vmatprep.subr.mxu0 0.0
  %368 = vmatpush1.msra.mxu0 0.0
  %369 = vmatprep.subr.mxu0 0.0
  %370 = vmatpush1.msra.mxu0 0.0
  %371 = vmatprep.subr.mxu0 0.0
  %372 = vmatpush1.msra.mxu0 0.0
  %373 = vmatprep.subr.mxu0 0.0
  %374 = vmatpush1.msra.mxu0 0.0
  %375 = vmatprep.subr.mxu0 0.0
  %376 = vmatpush1.msra.mxu0 0.0
  %377 = vmatprep.subr.mxu0 0.0
  %378 = vmatpush1.msra.mxu0 0.0
  %379 = vmatprep.subr.mxu0 0.0
  %380 = vmatpush1.msra.mxu0 0.0
  %381 = vmatprep.subr.mxu0 0.0
  %382 = vmatpush1.msra.mxu0 0.0
  %383 = vmatprep.subr.mxu0 0.0
  %384 = vmatpush1.msra.mxu0 0.0
  %385 = vmatprep.subr.mxu0 0.0
  %386 = vmatpush1.msra.mxu0 0.0
  %387 = vmatprep.subr.mxu0 0.0
  %388 = vmatpush1.msra.mxu0 0.0
  %389 = vmatprep.subr.mxu0 0.0
  %390 = vmatpush1.msra.mxu0 0.0
  %391 = vmatprep.subr.mxu0 0.0
  %392 = vmatpush1.msra.mxu0 0.0
  %393 = vmatprep.subr.mxu0 0.0
  %394 = vmatpush1.msra.mxu0 0.0
  %395 = vmatprep.subr.mxu0 0.0
  %396 = vmatpush1.msra.mxu0 0.0
  %397 = vmatprep.mubr.f32.mxu0 0.0
  %398 = vmatmul.mubr.f32.gmra.mrb[0].mxu0 %v332
  %v399 = vpop.f32.mrb[0].mxu0
  %v400 = vadd.f32 0.0, %v399
  %v401 = vpop.f32.mrb[0].mxu0
  %402 = vdwg.mxu0
  %v403 = vadd.f32 %v319, %v400
  %v404 = vld [vmem:[%s5] sm:$0x1]
  %v406 = vlaneseq
  %v407 = vshrl.u32 %v406, 7
  %v408 = vsub.s32 0, %v407
  %v409 = vrot.slane %v404, %v408
  %v411 = vadd.f32 %v403, %v409
  %vm412 = vcmask 23552
  %413 = vst.msk [vmem:[%s6] sm:$0xff] %vm412, %v411
  // Predicated region
  $region26: #{tpu_custom_call.1} parent=0 // pred_check
    _
  $region27: #{tpu_custom_call.1} parent=0 // pred_check_branch
    %415 = sbr.rel (0) target = $region29
  $region28: #{tpu_custom_call.1} parent=0 // pred_region
    _
  $region29: #{tpu_custom_call.1} parent=0 // pred_fallthru
    _
  // Predicated region
  $region30: #{tpu_custom_call.1} parent=0 // pred_check
    _
  $region31: #{tpu_custom_call.1} parent=0 // pred_check_branch
    %417 = sbr.rel (0) target = $region33
  $region32: #{tpu_custom_call.1} parent=0 // pred_region
    _
  $region33: #{tpu_custom_call.1} parent=0 // pred_fallthru
    _

</llo_original>
